<compile_context>
chip_gen: v5e
topology: v5e:2x2
jax: 0.10.0
libtpu: 0.0.40
codegen_flags: <defaults>
</compile_context>

<pallas_src>
import functools

import numpy as np
import jax
import jax.numpy as jnp
from jax.experimental import pallas as pl
from jax.experimental.pallas import tpu as pltpu


# -----------------------------------------------------------------------------
# Pallas kernel: the entire ChemProp forward runs in one VMEM-resident kernel.
# -----------------------------------------------------------------------------
def chemprop_kernel(
    x_ref,       # [Np, NDp]  bf16  node features (zero-padded)
    ea_ref,      # [Ep, EDp]  bf16  edge features (zero-padded)
    gsrc_ref,    # [Ep, Np]   bf16  one-hot of edge src  (gather)
    adst_ref,    # [Np, Ep]   bf16  one-hot of edge dst  (scatter-sum)
    bpool_ref,   # [Gp, Np]   bf16  one-hot of batch assignment
    invc_ref,    # [Gp, 1]    f32   1 / node count per graph
    w1a_ref,     # [NDp, Hp]  bf16  W1 node part
    w1b_ref,     # [EDp, Hp]  bf16  W1 edge part
    w2_ref,      # [Hp, Hp]   bf16
    w3a_ref,     # [NDp, Hp]  bf16  W3 node part
    w3b_ref,     # [Hp, Hp]   bf16  W3 message part
    b3_ref,      # [1, Hp]    f32
    out_ref,     # [Gp, Hp]   f32
    *,
    depth: int,
):
    f32 = jnp.float32
    bf16 = jnp.bfloat16

    # Load everything once (hoisted above the depth loop).
    x = x_ref[...]
    ea = ea_ref[...]
    G = gsrc_ref[...]
    A = adst_ref[...]
    B = bpool_ref[...]
    w1a = w1a_ref[...]
    w1b = w1b_ref[...]
    w2 = w2_ref[...]
    w3a = w3a_ref[...]
    w3b = w3b_ref[...]
    b3 = b3_ref[...]

    # init_msg = cat([x[src], edge_attr]); h0 = relu(W1 @ init_msg)
    x_src = jnp.dot(G, x, preferred_element_type=f32).astype(bf16)      # [Ep, NDp]
    pre1 = (jnp.dot(x_src, w1a, preferred_element_type=f32)
            + jnp.dot(ea, w1b, preferred_element_type=f32))             # [Ep, Hp] f32
    h0 = jnp.maximum(pre1, 0.0)
    h = h0

    Ep, Hp = h0.shape
    # Parity mask for the adjacent-pair reverse-edge swap (hoisted).
    row_id = jax.lax.broadcasted_iota(jnp.int32, (Ep, Hp), 0)
    even = (row_id % 2) == 0

    # depth-1 rounds of directed message passing (depth is small & static).
    for _ in range(depth - 1):
        hb = h.astype(bf16)
        m_node = jnp.dot(A, hb, preferred_element_type=f32)             # scatter_sum -> [Np, Hp]
        m_all = jnp.dot(G, m_node.astype(bf16),
                        preferred_element_type=f32)                     # m[src]      -> [Ep, Hp]
        # m_rev = h[revedge]; edges are canonicalized so rev(2p)=2p+1, rev(2p+1)=2p:
        # even rows take the next row, odd rows take the previous row.
        m_rev = jnp.where(even,
                          jnp.roll(h, -1, axis=0),
                          jnp.roll(h, 1, axis=0))
        m = m_all - m_rev
        h = jnp.maximum(
            h0 + jnp.dot(m.astype(bf16), w2, preferred_element_type=f32), 0.0)

    # aggregate_at_nodes + readout
    v_msg = jnp.dot(A, h.astype(bf16), preferred_element_type=f32)      # [Np, Hp]
    pre3 = (jnp.dot(x, w3a, preferred_element_type=f32)
            + jnp.dot(v_msg.astype(bf16), w3b, preferred_element_type=f32)
            + b3)                                                       # [Np, Hp]
    node_attr = jnp.maximum(pre3, 0.0)

    # global mean pool (1/count precomputed in wrapper)
    pooled = jnp.dot(B, node_attr.astype(bf16), preferred_element_type=f32)  # [Gp, Hp]
    out_ref[...] = pooled * invc_ref[...]


# -----------------------------------------------------------------------------
# Wrapper: canonicalizes edge order, pads to TPU-friendly shapes, builds the
# (bf16, exact) one-hot operators, and calls the kernel.
# -----------------------------------------------------------------------------
def _round_up(v, m):
    return ((v + m - 1) // m) * m


def _pad2(a, rows, cols, dtype):
    a = np.asarray(a, np.float32)
    out = np.zeros((rows, cols), np.float32)
    out[: a.shape[0], : a.shape[1]] = a
    return jnp.asarray(out, dtype)


def chemprop_forward(params, x, edge_index, revedge_index, edge_attr, batch,
                     num_graphs, depth=3):
    x_np = np.asarray(x, np.float32)
    ea_np = np.asarray(edge_attr, np.float32)
    src = np.asarray(edge_index[0])
    dst = np.asarray(edge_index[1])
    rev = np.asarray(revedge_index)
    batch_np = np.asarray(batch)

    N, node_dim = x_np.shape
    E, edge_dim = ea_np.shape
    H = int(np.asarray(params["W2"]).shape[0])

    # ---- canonicalize edges into adjacent (fwd, rev) pairs -------------------
    # revedge_index is a fixed-point-free involution; reordering edges does not
    # change the forward output (per-edge states are only consumed via node sums).
    assert np.all(rev[rev] == np.arange(E)) and np.all(rev != np.arange(E)), \
        "revedge_index must be a fixed-point-free involution"
    perm, seen = [], np.zeros(E, bool)
    for e in range(E):
        if not seen[e]:
            r = int(rev[e])
            perm.extend([e, r])
            seen[e] = seen[r] = True
    perm = np.asarray(perm, np.int64)
    src, dst, ea_np = src[perm], dst[perm], ea_np[perm]

    # ---- padded, lane-dense shapes -------------------------------------------
    LANE, SUB = 128, 8
    Hp = _round_up(H, LANE)
    NDp = _round_up(node_dim, LANE)
    EDp = _round_up(edge_dim, LANE)
    Np = _round_up(N, SUB)
    Ep = _round_up(E, SUB)
    if Ep > E and Np == N:
        Np += SUB            # need a padded (zero) node for dummy edges to target
    Gp = _round_up(num_graphs, SUB)

    f32, bf16 = jnp.float32, jnp.bfloat16

    x_p = _pad2(x_np, Np, NDp, bf16)
    ea_p = _pad2(ea_np, Ep, EDp, bf16)

    # Dummy (padded) edges target the first padded node -> carry zero messages.
    src_full = np.full(Ep, N, np.int64); src_full[:E] = src
    dst_full = np.full(Ep, N, np.int64); dst_full[:E] = dst
    gsrc = jnp.asarray((src_full[:, None] == np.arange(Np)[None, :]).astype(np.float32), bf16)
    adst = jnp.asarray((np.arange(Np)[:, None] == dst_full[None, :]).astype(np.float32), bf16)

    batch_full = np.full(Np, Gp, np.int64)          # sentinel: matches no graph row
    batch_full[:N] = batch_np
    bpool = jnp.asarray((np.arange(Gp)[:, None] == batch_full[None, :]).astype(np.float32), bf16)

    counts = np.bincount(batch_np, minlength=num_graphs).astype(np.float32)
    inv = np.ones((Gp, 1), np.float32)
    inv[:num_graphs, 0] = 1.0 / np.maximum(counts, 1.0)   # empty-graph safe
    invc = jnp.asarray(inv)

    W1 = np.asarray(params["W1"], np.float32)
    W2 = np.asarray(params["W2"], np.float32)
    W3 = np.asarray(params["W3"], np.float32)
    b3 = np.asarray(params["b3"], np.float32)

    w1a = _pad2(W1[:node_dim], NDp, Hp, bf16)
    w1b = _pad2(W1[node_dim:], EDp, Hp, bf16)
    w2p = _pad2(W2, Hp, Hp, bf16)
    w3a = _pad2(W3[:node_dim], NDp, Hp, bf16)
    w3b = _pad2(W3[node_dim:], Hp, Hp, bf16)
    b3p = _pad2(b3.reshape(1, H), 1, Hp, f32)

    args = (x_p, ea_p, gsrc, adst, bpool, invc, w1a, w1b, w2p, w3a, w3b, b3p)

    # Explicit VMEM budget: inputs/outputs + a generous allowance for the f32
    # intermediates (h, h0, m, rolls, node/readout buffers), clipped for v7x.
    in_bytes = sum(int(np.prod(a.shape)) * a.dtype.itemsize for a in args)
    out_bytes = Gp * Hp * 4
    scratch = 12 * max(Ep, Np) * Hp * 4
    vmem_limit = int(min(max(2 * (in_bytes + out_bytes) + scratch + (4 << 20),
                             16 << 20), 100 << 20))

    vmem = pl.BlockSpec(memory_space=pltpu.MemorySpace.VMEM)

    out = pl.pallas_call(
        functools.partial(chemprop_kernel, depth=depth),
        out_shape=jax.ShapeDtypeStruct((Gp, Hp), f32),
        in_specs=[vmem] * len(args),
        out_specs=vmem,
        compiler_params=pltpu.CompilerParams(vmem_limit_bytes=vmem_limit),
    )(*args)

    return out[:num_graphs, :H]


# -----------------------------------------------------------------------------
# Pure-JAX f32 reference (mirrors the PyTorch module) for a correctness check.
# -----------------------------------------------------------------------------
def chemprop_reference(params, x, edge_index, revedge_index, edge_attr, batch,
                       num_graphs, depth=3):
    f32 = jnp.float32
    N = x.shape[0]
    src, dst = edge_index[0], edge_index[1]

    init_msg = jnp.concatenate([x[src], edge_attr], axis=1).astype(f32)
    h0 = jax.nn.relu(init_msg @ params["W1"])
    h = h0
    for _ in range(depth - 1):
        m_node = jax.ops.segment_sum(h, dst, num_segments=N)
        m = m_node[src] - h[revedge_index]
        h = jax.nn.relu(h0 + m @ params["W2"])
    v_msg = jax.ops.segment_sum(h, dst, num_segments=N)
    z = jnp.concatenate([x.astype(f32), v_msg], axis=1)
    node_attr = jax.nn.relu(z @ params["W3"] + params["b3"])
    sums = jax.ops.segment_sum(node_attr, batch, num_segments=num_graphs)
    counts = jax.ops.segment_sum(jnp.ones((N, 1), f32), batch, num_segments=num_graphs)
    return sums / jnp.maximum(counts, 1.0)


if __name__ == "__main__":
    key = jax.random.PRNGKey(0)

    # Small, forward-consistent shapes.
    hidden_dim = 32
    node_dim = 8
    edge_dim = 4
    depth = 3
    num_graphs = 2
    nodes_per_graph = 6
    N = num_graphs * nodes_per_graph          # 12 nodes

    # Two 6-node cycle graphs; each undirected edge becomes two directed edges.
    src_list, dst_list = [], []
    for g in range(num_graphs):
        off = g * nodes_per_graph
        for i in range(nodes_per_graph):
            a = off + i
            b = off + (i + 1) % nodes_per_graph
            src_list += [a, b]
            dst_list += [b, a]
    E = len(src_list)                          # 24 directed edges
    edge_index = jnp.array([src_list, dst_list], dtype=jnp.int32)
    revedge_index = jnp.array(
        [e + 1 if e % 2 == 0 else e - 1 for e in range(E)], dtype=jnp.int32)
    batch = jnp.repeat(jnp.arange(num_graphs, dtype=jnp.int32), nodes_per_graph)

    k_x, k_ea, k_w1, k_w2, k_w3, k_b3 = jax.random.split(key, 6)
    x = jax.random.normal(k_x, (N, node_dim), dtype=jnp.float32)
    edge_attr = jax.random.normal(k_ea, (E, edge_dim), dtype=jnp.float32)

    # Deterministic synthetic parameters (stored transposed: y = x @ W).
    params = {
        "W1": 0.2 * jax.random.normal(k_w1, (node_dim + edge_dim, hidden_dim), jnp.float32),
        "W2": 0.2 * jax.random.normal(k_w2, (hidden_dim, hidden_dim), jnp.float32),
        "W3": 0.2 * jax.random.normal(k_w3, (node_dim + hidden_dim, hidden_dim), jnp.float32),
        "b3": 0.1 * jax.random.normal(k_b3, (hidden_dim,), jnp.float32),
    }

    out = chemprop_forward(params, x, edge_index, revedge_index, edge_attr,
                           batch, num_graphs, depth=depth)
    out = jax.block_until_ready(out)

    ref = chemprop_reference(params, x, edge_index, revedge_index, edge_attr,
                             batch, num_graphs, depth=depth)
    assert out.shape == (num_graphs, hidden_dim)
    # bf16 MXU operands (f32 accumulation) -> slightly looser tolerance vs f32 ref.
    assert jnp.allclose(out, ref, atol=5e-2, rtol=5e-2), "mismatch vs reference"

    print("KERNEL_OK")
</pallas_src>

<mosaic_0001>
module attributes {stable_mosaic.version = 11 : i64} {
  func.func @chemprop_kernel(%arg0: memref<16x128xbf16, #tpu.memory_space<vmem>>, %arg1: memref<24x128xbf16, #tpu.memory_space<vmem>>, %arg2: memref<24x16xbf16, #tpu.memory_space<vmem>>, %arg3: memref<16x24xbf16, #tpu.memory_space<vmem>>, %arg4: memref<8x16xbf16, #tpu.memory_space<vmem>>, %arg5: memref<8x1xf32, #tpu.memory_space<vmem>>, %arg6: memref<128x128xbf16, #tpu.memory_space<vmem>>, %arg7: memref<128x128xbf16, #tpu.memory_space<vmem>>, %arg8: memref<128x128xbf16, #tpu.memory_space<vmem>>, %arg9: memref<128x128xbf16, #tpu.memory_space<vmem>>, %arg10: memref<128x128xbf16, #tpu.memory_space<vmem>>, %arg11: memref<1x128xf32, #tpu.memory_space<vmem>>, %arg12: memref<8x128xf32, #tpu.memory_space<vmem>>) attributes {dimension_semantics = [], scalar_prefetch = 0 : i64, scratch_operands = 0 : i64, tpu.core_type = #tpu.core_type<tc>} {
    %c0 = arith.constant 0 : index
    %c0_0 = arith.constant 0 : index
    %0 = vector.load %arg0[%c0, %c0_0] : memref<16x128xbf16, #tpu.memory_space<vmem>>, vector<16x128xbf16>
    %c0_1 = arith.constant 0 : index
    %c0_2 = arith.constant 0 : index
    %1 = vector.load %arg1[%c0_1, %c0_2] : memref<24x128xbf16, #tpu.memory_space<vmem>>, vector<24x128xbf16>
    %c0_3 = arith.constant 0 : index
    %c0_4 = arith.constant 0 : index
    %2 = vector.load %arg2[%c0_3, %c0_4] : memref<24x16xbf16, #tpu.memory_space<vmem>>, vector<24x16xbf16>
    %c0_5 = arith.constant 0 : index
    %c0_6 = arith.constant 0 : index
    %3 = vector.load %arg3[%c0_5, %c0_6] : memref<16x24xbf16, #tpu.memory_space<vmem>>, vector<16x24xbf16>
    %c0_7 = arith.constant 0 : index
    %c0_8 = arith.constant 0 : index
    %4 = vector.load %arg4[%c0_7, %c0_8] : memref<8x16xbf16, #tpu.memory_space<vmem>>, vector<8x16xbf16>
    %c0_9 = arith.constant 0 : index
    %c0_10 = arith.constant 0 : index
    %5 = vector.load %arg6[%c0_9, %c0_10] : memref<128x128xbf16, #tpu.memory_space<vmem>>, vector<128x128xbf16>
    %c0_11 = arith.constant 0 : index
    %c0_12 = arith.constant 0 : index
    %6 = vector.load %arg7[%c0_11, %c0_12] : memref<128x128xbf16, #tpu.memory_space<vmem>>, vector<128x128xbf16>
    %c0_13 = arith.constant 0 : index
    %c0_14 = arith.constant 0 : index
    %7 = vector.load %arg8[%c0_13, %c0_14] : memref<128x128xbf16, #tpu.memory_space<vmem>>, vector<128x128xbf16>
    %c0_15 = arith.constant 0 : index
    %c0_16 = arith.constant 0 : index
    %8 = vector.load %arg9[%c0_15, %c0_16] : memref<128x128xbf16, #tpu.memory_space<vmem>>, vector<128x128xbf16>
    %c0_17 = arith.constant 0 : index
    %c0_18 = arith.constant 0 : index
    %9 = vector.load %arg10[%c0_17, %c0_18] : memref<128x128xbf16, #tpu.memory_space<vmem>>, vector<128x128xbf16>
    %c0_19 = arith.constant 0 : index
    %c0_20 = arith.constant 0 : index
    %10 = vector.load %arg11[%c0_19, %c0_20] : memref<1x128xf32, #tpu.memory_space<vmem>>, vector<1x128xf32>
    %cst = arith.constant dense<0.000000e+00> : vector<24x128xf32>
    %11 = tpu.matmul %2, %0, %cst {dimension_numbers = #tpu.dot_dimension_numbers<[1], [0], [0], [1], [0, 0, 1, 1], [], []>} : vector<24x16xbf16>, vector<16x128xbf16>, vector<24x128xf32> -> vector<24x128xf32>
    %12 = arith.truncf %11 : vector<24x128xf32> to vector<24x128xbf16>
    %cst_21 = arith.constant dense<0.000000e+00> : vector<24x128xf32>
    %13 = tpu.matmul %12, %5, %cst_21 {dimension_numbers = #tpu.dot_dimension_numbers<[1], [0], [0], [1], [0, 0, 1, 1], [], []>} : vector<24x128xbf16>, vector<128x128xbf16>, vector<24x128xf32> -> vector<24x128xf32>
    %cst_22 = arith.constant dense<0.000000e+00> : vector<24x128xf32>
    %14 = tpu.matmul %1, %6, %cst_22 {dimension_numbers = #tpu.dot_dimension_numbers<[1], [0], [0], [1], [0, 0, 1, 1], [], []>} : vector<24x128xbf16>, vector<128x128xbf16>, vector<24x128xf32> -> vector<24x128xf32>
    %15 = arith.addf %13, %14 : vector<24x128xf32>
    %cst_23 = arith.constant 0.000000e+00 : f32
    %16 = vector.broadcast %cst_23 : f32 to vector<24x128xf32>
    %17 = arith.maximumf %15, %16 : vector<24x128xf32>
    %18 = tpu.iota {dimensions = array<i32: 0>} : vector<24x128xi32>
    %c2_i32 = arith.constant 2 : i32
    %c0_i32 = arith.constant 0 : i32
    %19 = arith.cmpi eq, %c2_i32, %c0_i32 : i32
    %c1_i32 = arith.constant 1 : i32
    %20 = arith.select %19, %c1_i32, %c2_i32 : i32
    %21 = vector.broadcast %20 : i32 to vector<24x128xi32>
    %22 = arith.remsi %18, %21 : vector<24x128xi32>
    %c0_i32_24 = arith.constant 0 : i32
    %23 = vector.broadcast %c0_i32_24 : i32 to vector<24x128xi32>
    %24 = arith.cmpi ne, %22, %23 : vector<24x128xi32>
    %c0_i32_25 = arith.constant 0 : i32
    %25 = vector.broadcast %c0_i32_25 : i32 to vector<24x128xi32>
    %26 = arith.cmpi slt, %22, %25 : vector<24x128xi32>
    %c0_i32_26 = arith.constant 0 : i32
    %27 = arith.cmpi slt, %20, %c0_i32_26 : i32
    %28 = vector.broadcast %27 : i1 to vector<24x128xi1>
    %29 = vector.broadcast %28 : vector<24x128xi1> to vector<24x128xi1>
    %30 = arith.xori %26, %29 : vector<24x128xi1>
    %31 = arith.andi %30, %24 : vector<24x128xi1>
    %32 = vector.broadcast %20 : i32 to vector<24x128xi32>
    %33 = arith.addi %22, %32 : vector<24x128xi32>
    %34 = arith.select %31, %33, %22 : vector<24x128xi1>, vector<24x128xi32>
    %c0_i32_27 = arith.constant 0 : i32
    %35 = vector.broadcast %c0_i32_27 : i32 to vector<24x128xi32>
    %36 = arith.cmpi eq, %34, %35 : vector<24x128xi32>
    %37 = arith.truncf %17 : vector<24x128xf32> to vector<24x128xbf16>
    %cst_28 = arith.constant dense<0.000000e+00> : vector<16x128xf32>
    %38 = tpu.matmul %3, %37, %cst_28 {dimension_numbers = #tpu.dot_dimension_numbers<[1], [0], [0], [1], [0, 0, 1, 1], [], []>} : vector<16x24xbf16>, vector<24x128xbf16>, vector<16x128xf32> -> vector<16x128xf32>
    %39 = arith.truncf %38 : vector<16x128xf32> to vector<16x128xbf16>
    %cst_29 = arith.constant dense<0.000000e+00> : vector<24x128xf32>
    %40 = tpu.matmul %2, %39, %cst_29 {dimension_numbers = #tpu.dot_dimension_numbers<[1], [0], [0], [1], [0, 0, 1, 1], [], []>} : vector<24x16xbf16>, vector<16x128xbf16>, vector<24x128xf32> -> vector<24x128xf32>
    %41 = vector.extract_strided_slice %17 {offsets = [1, 0], sizes = [23, 128], strides = [1, 1]} : vector<24x128xf32> to vector<23x128xf32>
    %42 = vector.extract_strided_slice %17 {offsets = [0, 0], sizes = [1, 128], strides = [1, 1]} : vector<24x128xf32> to vector<1x128xf32>
    %43 = tpu.concatenate %41, %42 in 0 : vector<23x128xf32>, vector<1x128xf32> -> vector<24x128xf32>
    %44 = vector.extract_strided_slice %17 {offsets = [23, 0], sizes = [1, 128], strides = [1, 1]} : vector<24x128xf32> to vector<1x128xf32>
    %45 = vector.extract_strided_slice %17 {offsets = [0, 0], sizes = [23, 128], strides = [1, 1]} : vector<24x128xf32> to vector<23x128xf32>
    %46 = tpu.concatenate %44, %45 in 0 : vector<1x128xf32>, vector<23x128xf32> -> vector<24x128xf32>
    %47 = arith.select %36, %43, %46 : vector<24x128xi1>, vector<24x128xf32>
    %48 = arith.subf %40, %47 : vector<24x128xf32>
    %49 = arith.truncf %48 : vector<24x128xf32> to vector<24x128xbf16>
    %cst_30 = arith.constant dense<0.000000e+00> : vector<24x128xf32>
    %50 = tpu.matmul %49, %7, %cst_30 {dimension_numbers = #tpu.dot_dimension_numbers<[1], [0], [0], [1], [0, 0, 1, 1], [], []>} : vector<24x128xbf16>, vector<128x128xbf16>, vector<24x128xf32> -> vector<24x128xf32>
    %51 = arith.addf %17, %50 : vector<24x128xf32>
    %cst_31 = arith.constant 0.000000e+00 : f32
    %52 = vector.broadcast %cst_31 : f32 to vector<24x128xf32>
    %53 = arith.maximumf %51, %52 : vector<24x128xf32>
    %54 = arith.truncf %53 : vector<24x128xf32> to vector<24x128xbf16>
    %cst_32 = arith.constant dense<0.000000e+00> : vector<16x128xf32>
    %55 = tpu.matmul %3, %54, %cst_32 {dimension_numbers = #tpu.dot_dimension_numbers<[1], [0], [0], [1], [0, 0, 1, 1], [], []>} : vector<16x24xbf16>, vector<24x128xbf16>, vector<16x128xf32> -> vector<16x128xf32>
    %56 = arith.truncf %55 : vector<16x128xf32> to vector<16x128xbf16>
    %cst_33 = arith.constant dense<0.000000e+00> : vector<24x128xf32>
    %57 = tpu.matmul %2, %56, %cst_33 {dimension_numbers = #tpu.dot_dimension_numbers<[1], [0], [0], [1], [0, 0, 1, 1], [], []>} : vector<24x16xbf16>, vector<16x128xbf16>, vector<24x128xf32> -> vector<24x128xf32>
    %58 = vector.extract_strided_slice %53 {offsets = [1, 0], sizes = [23, 128], strides = [1, 1]} : vector<24x128xf32> to vector<23x128xf32>
    %59 = vector.extract_strided_slice %53 {offsets = [0, 0], sizes = [1, 128], strides = [1, 1]} : vector<24x128xf32> to vector<1x128xf32>
    %60 = tpu.concatenate %58, %59 in 0 : vector<23x128xf32>, vector<1x128xf32> -> vector<24x128xf32>
    %61 = vector.extract_strided_slice %53 {offsets = [23, 0], sizes = [1, 128], strides = [1, 1]} : vector<24x128xf32> to vector<1x128xf32>
    %62 = vector.extract_strided_slice %53 {offsets = [0, 0], sizes = [23, 128], strides = [1, 1]} : vector<24x128xf32> to vector<23x128xf32>
    %63 = tpu.concatenate %61, %62 in 0 : vector<1x128xf32>, vector<23x128xf32> -> vector<24x128xf32>
    %64 = arith.select %36, %60, %63 : vector<24x128xi1>, vector<24x128xf32>
    %65 = arith.subf %57, %64 : vector<24x128xf32>
    %66 = arith.truncf %65 : vector<24x128xf32> to vector<24x128xbf16>
    %cst_34 = arith.constant dense<0.000000e+00> : vector<24x128xf32>
    %67 = tpu.matmul %66, %7, %cst_34 {dimension_numbers = #tpu.dot_dimension_numbers<[1], [0], [0], [1], [0, 0, 1, 1], [], []>} : vector<24x128xbf16>, vector<128x128xbf16>, vector<24x128xf32> -> vector<24x128xf32>
    %68 = arith.addf %17, %67 : vector<24x128xf32>
    %cst_35 = arith.constant 0.000000e+00 : f32
    %69 = vector.broadcast %cst_35 : f32 to vector<24x128xf32>
    %70 = arith.maximumf %68, %69 : vector<24x128xf32>
    %71 = arith.truncf %70 : vector<24x128xf32> to vector<24x128xbf16>
    %cst_36 = arith.constant dense<0.000000e+00> : vector<16x128xf32>
    %72 = tpu.matmul %3, %71, %cst_36 {dimension_numbers = #tpu.dot_dimension_numbers<[1], [0], [0], [1], [0, 0, 1, 1], [], []>} : vector<16x24xbf16>, vector<24x128xbf16>, vector<16x128xf32> -> vector<16x128xf32>
    %cst_37 = arith.constant dense<0.000000e+00> : vector<16x128xf32>
    %73 = tpu.matmul %0, %8, %cst_37 {dimension_numbers = #tpu.dot_dimension_numbers<[1], [0], [0], [1], [0, 0, 1, 1], [], []>} : vector<16x128xbf16>, vector<128x128xbf16>, vector<16x128xf32> -> vector<16x128xf32>
    %74 = arith.truncf %72 : vector<16x128xf32> to vector<16x128xbf16>
    %cst_38 = arith.constant dense<0.000000e+00> : vector<16x128xf32>
    %75 = tpu.matmul %74, %9, %cst_38 {dimension_numbers = #tpu.dot_dimension_numbers<[1], [0], [0], [1], [0, 0, 1, 1], [], []>} : vector<16x128xbf16>, vector<128x128xbf16>, vector<16x128xf32> -> vector<16x128xf32>
    %76 = arith.addf %73, %75 : vector<16x128xf32>
    %77 = vector.broadcast %10 : vector<1x128xf32> to vector<16x128xf32>
    %78 = arith.addf %76, %77 : vector<16x128xf32>
    %cst_39 = arith.constant 0.000000e+00 : f32
    %79 = vector.broadcast %cst_39 : f32 to vector<16x128xf32>
    %80 = arith.maximumf %78, %79 : vector<16x128xf32>
    %81 = arith.truncf %80 : vector<16x128xf32> to vector<16x128xbf16>
    %cst_40 = arith.constant dense<0.000000e+00> : vector<8x128xf32>
    %82 = tpu.matmul %4, %81, %cst_40 {dimension_numbers = #tpu.dot_dimension_numbers<[1], [0], [0], [1], [0, 0, 1, 1], [], []>} : vector<8x16xbf16>, vector<16x128xbf16>, vector<8x128xf32> -> vector<8x128xf32>
    %c0_41 = arith.constant 0 : index
    %c0_42 = arith.constant 0 : index
    %83 = vector.load %arg5[%c0_41, %c0_42] : memref<8x1xf32, #tpu.memory_space<vmem>>, vector<8x1xf32>
    %84 = vector.broadcast %83 : vector<8x1xf32> to vector<8x128xf32>
    %85 = arith.mulf %82, %84 : vector<8x128xf32>
    %c0_43 = arith.constant 0 : index
    %c0_44 = arith.constant 0 : index
    %86 = vector.load %arg12[%c0_43, %c0_44] : memref<8x128xf32, #tpu.memory_space<vmem>>, vector<8x128xf32>
    tpu.vector_store %arg12[%c0_43, %c0_44], %85 {strides = array<i32>} : memref<8x128xf32, #tpu.memory_space<vmem>>, vector<8x128xf32>,
    return
  }
}

</mosaic_0001>

<llo_original>
// kernel: tpu_custom_call.1
$region0: #{tpu_custom_call.1}
  #allocation0 [shape = 'u32[]', space=smem, size = 0x4, offset = 0x4, fixed_abs, tag = 'smem constant byte address 0x4 - core index']
  #allocation1 [shape = 'u32[72,128]{1,0:T(1,128)}', space=vmem, size = 0x9000, scoped, tag = 'internal scratch']
  %s0 = inlined_call_operand.vmem [shape: bf16[16,128], index: 0, kind: input, shape index: {}]
  %s1 = inlined_call_operand.vmem [shape: bf16[24,128], index: 1, kind: input, shape index: {}]
  %s2 = inlined_call_operand.vmem [shape: bf16[24,16], index: 2, kind: input, shape index: {}]
  %s3 = inlined_call_operand.hbm [shape: bf16[16,24], index: 3, kind: input, shape index: {}]
  %s4 = inlined_call_operand.hbm [shape: bf16[8,16], index: 4, kind: input, shape index: {}]
  %s5 = inlined_call_operand.vmem [shape: f32[8,1], index: 5, kind: input, shape index: {}]
  %s6 = inlined_call_operand.hbm [shape: bf16[128,128], index: 6, kind: input, shape index: {}]
  %s7 = inlined_call_operand.hbm [shape: bf16[128,128], index: 7, kind: input, shape index: {}]
  %s8 = inlined_call_operand.hbm [shape: bf16[128,128], index: 8, kind: input, shape index: {}]
  %s9 = inlined_call_operand.hbm [shape: bf16[128,128], index: 9, kind: input, shape index: {}]
  %s10 = inlined_call_operand.hbm [shape: bf16[128,128], index: 10, kind: input, shape index: {}]
  %s11 = inlined_call_operand.vmem [shape: f32[1,128], index: 11, kind: input, shape index: {}]
  %s12 = inlined_call_operand.hbm [shape: f32[8,128], index: 12, kind: output, shape index: {}]
  %s13 = sld [smem:[#allocation0]]
  $region86: #{tpu_custom_call.1} parent=0
    _
  %s15 = ssub.s32 1, %s13
  %s16 = scalar_select 0, %s15, %s13
  $region1: #{tpu_custom_call.1} parent=0
    #allocation2 [shape = 'u8[4096]{0}', space=vmem, size = 0x1000, scoped, tag = 'input window, operand 3, single buffered']
    #allocation3 [shape = 's32[1]{0}', space=sflag, size = 0x4, scoped, tag = 'scoped memory for tpu_custom_call.1']
    #allocation4 [shape = 's32[1]{0}', space=sflag, size = 0x4, scoped, tag = 'scoped memory for tpu_custom_call.1']
    #allocation5 [shape = 'u8[2048]{0}', space=vmem, size = 0x800, scoped, tag = 'input window, operand 4, single buffered']
    #allocation6 [shape = 's32[1]{0}', space=sflag, size = 0x4, scoped, tag = 'scoped memory for tpu_custom_call.1']
    #allocation7 [shape = 'u8[32768]{0}', space=vmem, size = 0x8000, scoped, tag = 'input window, operand 6, single buffered']
    #allocation8 [shape = 'u8[32768]{0}', space=vmem, size = 0x8000, scoped, tag = 'input window, operand 7, single buffered']
    #allocation9 [shape = 's32[1]{0}', space=sflag, size = 0x4, scoped, tag = 'scoped memory for tpu_custom_call.1']
    #allocation10 [shape = 'u8[32768]{0}', space=vmem, size = 0x8000, scoped, tag = 'input window, operand 8, single buffered']
    #allocation11 [shape = 'u8[32768]{0}', space=vmem, size = 0x8000, scoped, tag = 'input window, operand 9, single buffered']
    #allocation12 [shape = 's32[1]{0}', space=sflag, size = 0x4, scoped, tag = 'scoped memory for tpu_custom_call.1']
    #allocation13 [shape = 'u8[32768]{0}', space=vmem, size = 0x8000, scoped, tag = 'input window, operand 10, single buffered']
    #allocation14 [shape = 'u8[4096]{0}', space=vmem, size = 0x1000, scoped, tag = 'output window, operand 0, single buffered']
    %17 = vsyncpa [#allocation3], 0
    %18 = vsyncpa [#allocation6], 0
    %19 = vsyncpa [#allocation9], 0
    %20 = vsyncpa [#allocation12], 0
    %21 = vsyncpa [#allocation4], 0
    // Predicated region
    $region2: #{tpu_custom_call.1} parent=1 // pred_check
      _
    $region3: #{tpu_custom_call.1} parent=1 // pred_check_branch
      %23 = sbr.rel (0) target = $region5
    $region4: #{tpu_custom_call.1} parent=1 // pred_region
      _
    $region5: #{tpu_custom_call.1} parent=1 // pred_fallthru
      _
    // Predicated region
    $region6: #{tpu_custom_call.1} parent=1 // pred_check
      _
    $region7: #{tpu_custom_call.1} parent=1 // pred_check_branch
      %25 = sbr.rel (0) target = $region9
    $region8: #{tpu_custom_call.1} parent=1 // pred_region
      _
    $region9: #{tpu_custom_call.1} parent=1 // pred_fallthru
      _
    // Predicated region
    $region10: #{tpu_custom_call.1} parent=1 // pred_check
      _
    $region11: #{tpu_custom_call.1} parent=1 // pred_check_branch
      %27 = sbr.rel (0) target = $region13
    $region12: #{tpu_custom_call.1} parent=1 // pred_region
      _
    $region13: #{tpu_custom_call.1} parent=1 // pred_fallthru
      _
    // Predicated region
    $region14: #{tpu_custom_call.1} parent=1 // pred_check
      _
    $region15: #{tpu_custom_call.1} parent=1 // pred_check_branch
      %29 = sbr.rel (0) target = $region17
    $region16: #{tpu_custom_call.1} parent=1 // pred_region
      %31 = vsyncadd [#allocation3], 0
      %s32 = sshll.u32 %s3, 4
      %s33 = int_to_ptr.hbm [resolvable:$true] %s32
      %s34 = sshll.u32 [#allocation2], 4
      %s35 = int_to_ptr.vmem [resolvable:$true] %s34
      %40 = dma.hbm_to_vmem [thread:$0]  %s33, 128, %s35, [#allocation3], 64, 64, 4
    $region17: #{tpu_custom_call.1} parent=1 // pred_fallthru
      _
    // Predicated region
    $region18: #{tpu_custom_call.1} parent=1 // pred_check
      _
    $region19: #{tpu_custom_call.1} parent=1 // pred_check_branch
      %42 = sbr.rel (0) target = $region21
    $region20: #{tpu_custom_call.1} parent=1 // pred_region
      %44 = vsyncadd [#allocation6], 0
      %s46 = sshll.u32 %s4, 4
      %s47 = int_to_ptr.hbm [resolvable:$true] %s46
      %s48 = sshll.u32 [#allocation5], 4
      %s49 = int_to_ptr.vmem [resolvable:$true] %s48
      %51 = dma.hbm_to_vmem [thread:$0]  %s47, 64, %s49, [#allocation6]
    $region21: #{tpu_custom_call.1} parent=1 // pred_fallthru
      _
    // Predicated region
    $region22: #{tpu_custom_call.1} parent=1 // pred_check
      _
    $region23: #{tpu_custom_call.1} parent=1 // pred_check_branch
      %53 = sbr.rel (0) target = $region25
    $region24: #{tpu_custom_call.1} parent=1 // pred_region
      _
    $region25: #{tpu_custom_call.1} parent=1 // pred_fallthru
      _
    // Predicated region
    $region26: #{tpu_custom_call.1} parent=1 // pred_check
      _
    $region27: #{tpu_custom_call.1} parent=1 // pred_check_branch
      %55 = sbr.rel (0) target = $region29
    $region28: #{tpu_custom_call.1} parent=1 // pred_region
      %57 = vsyncadd [#allocation6], 0
      %s58 = sshll.u32 %s6, 4
      %s59 = int_to_ptr.hbm [resolvable:$true] %s58
      %s60 = sshll.u32 [#allocation7], 4
      %s61 = int_to_ptr.vmem [resolvable:$true] %s60
      %66 = dma.hbm_to_vmem [thread:$0]  %s59, 1024, %s61, [#allocation6], 64, 64, 4
    $region29: #{tpu_custom_call.1} parent=1 // pred_fallthru
      _
    // Predicated region
    $region30: #{tpu_custom_call.1} parent=1 // pred_check
      _
    $region31: #{tpu_custom_call.1} parent=1 // pred_check_branch
      %68 = sbr.rel (0) target = $region33
    $region32: #{tpu_custom_call.1} parent=1 // pred_region
      %70 = vsyncadd [#allocation9], 0
      %s71 = sshll.u32 %s7, 4
      %s72 = int_to_ptr.hbm [resolvable:$true] %s71
      %s73 = sshll.u32 [#allocation8], 4
      %s74 = int_to_ptr.vmem [resolvable:$true] %s73
      %79 = dma.hbm_to_vmem [thread:$0]  %s72, 1024, %s74, [#allocation9], 64, 64, 4
    $region33: #{tpu_custom_call.1} parent=1 // pred_fallthru
      _
    // Predicated region
    $region34: #{tpu_custom_call.1} parent=1 // pred_check
      _
    $region35: #{tpu_custom_call.1} parent=1 // pred_check_branch
      %81 = sbr.rel (0) target = $region37
    $region36: #{tpu_custom_call.1} parent=1 // pred_region
      %83 = vsyncadd [#allocation9], 0
      %s84 = sshll.u32 %s8, 4
      %s85 = int_to_ptr.hbm [resolvable:$true] %s84
      %s86 = sshll.u32 [#allocation10], 4
      %s87 = int_to_ptr.vmem [resolvable:$true] %s86
      %92 = dma.hbm_to_vmem [thread:$0]  %s85, 1024, %s87, [#allocation9], 64, 64, 4
    $region37: #{tpu_custom_call.1} parent=1 // pred_fallthru
      _
    // Predicated region
    $region38: #{tpu_custom_call.1} parent=1 // pred_check
      _
    $region39: #{tpu_custom_call.1} parent=1 // pred_check_branch
      %94 = sbr.rel (0) target = $region41
    $region40: #{tpu_custom_call.1} parent=1 // pred_region
      %96 = vsyncadd [#allocation12], 0
      %s97 = sshll.u32 %s9, 4
      %s98 = int_to_ptr.hbm [resolvable:$true] %s97
      %s99 = sshll.u32 [#allocation11], 4
      %s100 = int_to_ptr.vmem [resolvable:$true] %s99
      %105 = dma.hbm_to_vmem [thread:$0]  %s98, 1024, %s100, [#allocation12], 64, 64, 4
    $region41: #{tpu_custom_call.1} parent=1 // pred_fallthru
      _
    // Predicated region
    $region42: #{tpu_custom_call.1} parent=1 // pred_check
      _
    $region43: #{tpu_custom_call.1} parent=1 // pred_check_branch
      %107 = sbr.rel (0) target = $region45
    $region44: #{tpu_custom_call.1} parent=1 // pred_region
      %109 = vsyncadd [#allocation12], 0
      %s110 = sshll.u32 %s10, 4
      %s111 = int_to_ptr.hbm [resolvable:$true] %s110
      %s112 = sshll.u32 [#allocation13], 4
      %s113 = int_to_ptr.vmem [resolvable:$true] %s112
      %118 = dma.hbm_to_vmem [thread:$0]  %s111, 1024, %s113, [#allocation12], 64, 64, 4
    $region45: #{tpu_custom_call.1} parent=1 // pred_fallthru
      _
    // Predicated region
    $region46: #{tpu_custom_call.1} parent=1 // pred_check
      _
    $region47: #{tpu_custom_call.1} parent=1 // pred_check_branch
      %120 = sbr.rel (0) target = $region49
    $region48: #{tpu_custom_call.1} parent=1 // pred_region
      _
    $region49: #{tpu_custom_call.1} parent=1 // pred_fallthru
      _
    // Predicated region
    $region50: #{tpu_custom_call.1} parent=1 // pred_check
      _
    $region51: #{tpu_custom_call.1} parent=1 // pred_check_branch
      %122 = sbr.rel (0) target = $region53
    $region52: #{tpu_custom_call.1} parent=1 // pred_region
      %124 = dma.done [#allocation3], 128
    $region53: #{tpu_custom_call.1} parent=1 // pred_fallthru
      _
    // Predicated region
    $region54: #{tpu_custom_call.1} parent=1 // pred_check
      _
    $region55: #{tpu_custom_call.1} parent=1 // pred_check_branch
      %126 = sbr.rel (0) target = $region57
    $region56: #{tpu_custom_call.1} parent=1 // pred_region
      %128 = dma.done [#allocation6], 64
    $region57: #{tpu_custom_call.1} parent=1 // pred_fallthru
      _
    // Predicated region
    $region58: #{tpu_custom_call.1} parent=1 // pred_check
      _
    $region59: #{tpu_custom_call.1} parent=1 // pred_check_branch
      %130 = sbr.rel (0) target = $region61
    $region60: #{tpu_custom_call.1} parent=1 // pred_region
      %132 = dma.done [#allocation6], 1024
    $region61: #{tpu_custom_call.1} parent=1 // pred_fallthru
      _
    // Predicated region
    $region62: #{tpu_custom_call.1} parent=1 // pred_check
      _
    $region63: #{tpu_custom_call.1} parent=1 // pred_check_branch
      %134 = sbr.rel (0) target = $region65
    $region64: #{tpu_custom_call.1} parent=1 // pred_region
      %136 = dma.done [#allocation9], 1024
    $region65: #{tpu_custom_call.1} parent=1 // pred_fallthru
      _
    // Predicated region
    $region66: #{tpu_custom_call.1} parent=1 // pred_check
      _
    $region67: #{tpu_custom_call.1} parent=1 // pred_check_branch
      %138 = sbr.rel (0) target = $region69
    $region68: #{tpu_custom_call.1} parent=1 // pred_region
      %140 = dma.done [#allocation9], 1024
    $region69: #{tpu_custom_call.1} parent=1 // pred_fallthru
      _
    // Predicated region
    $region70: #{tpu_custom_call.1} parent=1 // pred_check
      _
    $region71: #{tpu_custom_call.1} parent=1 // pred_check_branch
      %142 = sbr.rel (0) target = $region73
    $region72: #{tpu_custom_call.1} parent=1 // pred_region
      %144 = dma.done [#allocation12], 1024
    $region73: #{tpu_custom_call.1} parent=1 // pred_fallthru
      _
    // Predicated region
    $region74: #{tpu_custom_call.1} parent=1 // pred_check
      _
    $region75: #{tpu_custom_call.1} parent=1 // pred_check_branch
      %146 = sbr.rel (0) target = $region77
    $region76: #{tpu_custom_call.1} parent=1 // pred_region
      %148 = dma.done [#allocation12], 1024
    $region77: #{tpu_custom_call.1} parent=1 // pred_fallthru
      _
    %v150 = vld [vmem:[%s0] sm:$0xf]
    %v151 = vld [vmem:[%s0 + $0x4] sm:$0xf]
    %v152 = vld [vmem:[%s1] sm:$0xf]
    %v153 = vld [vmem:[%s1 + $0x4] sm:$0xf]
    %v154 = vld [vmem:[%s1 + $0x8] sm:$0xf]
    %v155 = vld [vmem:[%s2] sm:$0xf]
    %v156 = vld [vmem:[%s2 + $0x4] sm:$0xf]
    %v157 = vld [vmem:[%s2 + $0x8] sm:$0xf]
    %v158 = vld [vmem:[#allocation2] sm:$0xf]
    %v159 = vld [vmem:[#allocation2 + $0x4] sm:$0xf]
    %v160 = vld [vmem:[#allocation5] sm:$0xf]
    %v161 = vld [vmem:[#allocation7] sm:$0xf]
    %v162 = vld [vmem:[#allocation7 + $0x4] sm:$0xf]
    %v163 = vld [vmem:[#allocation7 + $0x8] sm:$0xf]
    %v164 = vld [vmem:[#allocation7 + $0xc] sm:$0xf]
    %v165 = vld [vmem:[#allocation7 + $0x10] sm:$0xf]
    %v166 = vld [vmem:[#allocation7 + $0x14] sm:$0xf]
    %v167 = vld [vmem:[#allocation7 + $0x18] sm:$0xf]
    %v168 = vld [vmem:[#allocation7 + $0x1c] sm:$0xf]
    %v169 = vld [vmem:[#allocation7 + $0x20] sm:$0xf]
    %v170 = vld [vmem:[#allocation7 + $0x24] sm:$0xf]
    %v171 = vld [vmem:[#allocation7 + $0x28] sm:$0xf]
    %v172 = vld [vmem:[#allocation7 + $0x2c] sm:$0xf]
    %v173 = vld [vmem:[#allocation7 + $0x30] sm:$0xf]
    %v174 = vld [vmem:[#allocation7 + $0x34] sm:$0xf]
    %v175 = vld [vmem:[#allocation7 + $0x38] sm:$0xf]
    %v176 = vld [vmem:[#allocation7 + $0x3c] sm:$0xf]
    %v177 = vld [vmem:[#allocation8] sm:$0xf]
    %v178 = vld [vmem:[#allocation8 + $0x4] sm:$0xf]
    %v179 = vld [vmem:[#allocation8 + $0x8] sm:$0xf]
    %v180 = vld [vmem:[#allocation8 + $0xc] sm:$0xf]
    %v181 = vld [vmem:[#allocation8 + $0x10] sm:$0xf]
    %v182 = vld [vmem:[#allocation8 + $0x14] sm:$0xf]
    %v183 = vld [vmem:[#allocation8 + $0x18] sm:$0xf]
    %v184 = vld [vmem:[#allocation8 + $0x1c] sm:$0xf]
    %v185 = vld [vmem:[#allocation8 + $0x20] sm:$0xf]
    %v186 = vld [vmem:[#allocation8 + $0x24] sm:$0xf]
    %v187 = vld [vmem:[#allocation8 + $0x28] sm:$0xf]
    %v188 = vld [vmem:[#allocation8 + $0x2c] sm:$0xf]
    %v189 = vld [vmem:[#allocation8 + $0x30] sm:$0xf]
    %v190 = vld [vmem:[#allocation8 + $0x34] sm:$0xf]
    %v191 = vld [vmem:[#allocation8 + $0x38] sm:$0xf]
    %v192 = vld [vmem:[#allocation8 + $0x3c] sm:$0xf]
    %v193 = vld [vmem:[#allocation10] sm:$0xf]
    %v194 = vld [vmem:[#allocation10 + $0x4] sm:$0xf]
    %v195 = vld [vmem:[#allocation10 + $0x8] sm:$0xf]
    %v196 = vld [vmem:[#allocation10 + $0xc] sm:$0xf]
    %v197 = vld [vmem:[#allocation10 + $0x10] sm:$0xf]
    %v198 = vld [vmem:[#allocation10 + $0x14] sm:$0xf]
    %v199 = vld [vmem:[#allocation10 + $0x18] sm:$0xf]
    %v200 = vld [vmem:[#allocation10 + $0x1c] sm:$0xf]
    %v201 = vld [vmem:[#allocation10 + $0x20] sm:$0xf]
    %v202 = vld [vmem:[#allocation10 + $0x24] sm:$0xf]
    %v203 = vld [vmem:[#allocation10 + $0x28] sm:$0xf]
    %v204 = vld [vmem:[#allocation10 + $0x2c] sm:$0xf]
    %v205 = vld [vmem:[#allocation10 + $0x30] sm:$0xf]
    %v206 = vld [vmem:[#allocation10 + $0x34] sm:$0xf]
    %v207 = vld [vmem:[#allocation10 + $0x38] sm:$0xf]
    %v208 = vld [vmem:[#allocation10 + $0x3c] sm:$0xf]
    %v209 = vld [vmem:[#allocation11] sm:$0xf]
    %v210 = vld [vmem:[#allocation11 + $0x4] sm:$0xf]
    %v211 = vld [vmem:[#allocation11 + $0x8] sm:$0xf]
    %v212 = vld [vmem:[#allocation11 + $0xc] sm:$0xf]
    %v213 = vld [vmem:[#allocation11 + $0x10] sm:$0xf]
    %v214 = vld [vmem:[#allocation11 + $0x14] sm:$0xf]
    %v215 = vld [vmem:[#allocation11 + $0x18] sm:$0xf]
    %v216 = vld [vmem:[#allocation11 + $0x1c] sm:$0xf]
    %v217 = vld [vmem:[#allocation11 + $0x20] sm:$0xf]
    %v218 = vld [vmem:[#allocation11 + $0x24] sm:$0xf]
    %v219 = vld [vmem:[#allocation11 + $0x28] sm:$0xf]
    %v220 = vld [vmem:[#allocation11 + $0x2c] sm:$0xf]
    %v221 = vld [vmem:[#allocation11 + $0x30] sm:$0xf]
    %v222 = vld [vmem:[#allocation11 + $0x34] sm:$0xf]
    %v223 = vld [vmem:[#allocation11 + $0x38] sm:$0xf]
    %v224 = vld [vmem:[#allocation11 + $0x3c] sm:$0xf]
    %v225 = vld [vmem:[#allocation13] sm:$0xf]
    %v226 = vld [vmem:[#allocation13 + $0x4] sm:$0xf]
    %v227 = vld [vmem:[#allocation13 + $0x8] sm:$0xf]
    %v228 = vld [vmem:[#allocation13 + $0xc] sm:$0xf]
    %v229 = vld [vmem:[#allocation13 + $0x10] sm:$0xf]
    %v230 = vld [vmem:[#allocation13 + $0x14] sm:$0xf]
    %v231 = vld [vmem:[#allocation13 + $0x18] sm:$0xf]
    %v232 = vld [vmem:[#allocation13 + $0x1c] sm:$0xf]
    %v233 = vld [vmem:[#allocation13 + $0x20] sm:$0xf]
    %v234 = vld [vmem:[#allocation13 + $0x24] sm:$0xf]
    %v235 = vld [vmem:[#allocation13 + $0x28] sm:$0xf]
    %v236 = vld [vmem:[#allocation13 + $0x2c] sm:$0xf]
    %v237 = vld [vmem:[#allocation13 + $0x30] sm:$0xf]
    %v238 = vld [vmem:[#allocation13 + $0x34] sm:$0xf]
    %v239 = vld [vmem:[#allocation13 + $0x38] sm:$0xf]
    %v240 = vld [vmem:[#allocation13 + $0x3c] sm:$0xf]
    %v241 = vld [vmem:[%s11] sm:$0x1]
    %v245 = vunpack.c.l.b16 %v155
    %v246 = vunpack.c.l.b16 %v156
    %v247 = vunpack.c.l.b16 %v157
    %v248 = vpack.c.b16 %v246, %v245
    %v249 = vpack.c.b16 %v247, %v247
    %v252 = vunpack.c.l.b16 %v150
    %v253 = vunpack.c.l.b16 %v151
    %v254 = vpack.c.b16 %v253, %v252
    %vm256 = vcmask 130048
    %v258 = vsel %vm256, %v248, 0
    %v261 = vsel %vm256, %v249, 0
    %263 = vmatpush.bf16.msra.mxu0 0
    %264 = vmatpush.bf16.msra.mxu0 0
    %265 = vmatpush.bf16.msra.mxu0 0
    %266 = vmatpush.bf16.msra.mxu0 0
    %267 = vmatpush.bf16.msra.mxu0 0
    %268 = vmatpush.bf16.msra.mxu0 0
    %269 = vmatpush.bf16.msra.mxu0 0
    %270 = vmatpush.bf16.msra.mxu0 %v254
    %271 = vmatmul.bf16.gmra.mxu0 %v258
    %v272 = vpop.f32.mrf.mxu0
    %v273 = vadd.f32 0.0, %v272
    %v274 = vpop.f32.mrf.mxu0
    %v275 = vadd.f32 0.0, %v274
    %276 = vmatmul.bf16.gmra.mxu0 %v261
    %v277 = vpop.f32.mrf.mxu0
    %v278 = vadd.f32 0.0, %v277
    %v279 = vpop.f32.mrf.mxu0
    %280 = vdwg.mxu0
    %v281 = vpack.c.bf16 %v275, %v273
    %v282 = vpack.c.bf16 %v278, %v278
    %v286 = vunpack.c.l.b16 %v152
    %v287 = vunpack.c.l.b16 %v153
    %v288 = vunpack.c.l.b16 %v154
    %v289 = vpack.c.b16 %v287, %v286
    %v290 = vpack.c.b16 %v288, %v288
    %v309 = vunpack.c.l.b16 %v177
    %v310 = vunpack.c.l.b16 %v178
    %v311 = vunpack.c.l.b16 %v179
    %v312 = vunpack.c.l.b16 %v180
    %v313 = vunpack.c.l.b16 %v181
    %v314 = vunpack.c.l.b16 %v182
    %v315 = vunpack.c.l.b16 %v183
    %v316 = vunpack.c.l.b16 %v184
    %v317 = vunpack.c.l.b16 %v185
    %v318 = vunpack.c.l.b16 %v186
    %v319 = vunpack.c.l.b16 %v187
    %v320 = vunpack.c.l.b16 %v188
    %v321 = vunpack.c.l.b16 %v189
    %v322 = vunpack.c.l.b16 %v190
    %v323 = vunpack.c.l.b16 %v191
    %v324 = vunpack.c.l.b16 %v192
    %v325 = vpack.c.b16 %v310, %v309
    %v326 = vpack.c.b16 %v312, %v311
    %v327 = vpack.c.b16 %v314, %v313
    %v328 = vpack.c.b16 %v316, %v315
    %v329 = vpack.c.b16 %v318, %v317
    %v330 = vpack.c.b16 %v320, %v319
    %v331 = vpack.c.b16 %v322, %v321
    %v332 = vpack.c.b16 %v324, %v323
    %341 = vmatpush.bf16.msra.mxu0 %v332
    %342 = vmatpush.bf16.msra.mxu0 %v331
    %343 = vmatpush.bf16.msra.mxu0 %v330
    %344 = vmatpush.bf16.msra.mxu0 %v329
    %345 = vmatpush.bf16.msra.mxu0 %v328
    %346 = vmatpush.bf16.msra.mxu0 %v327
    %347 = vmatpush.bf16.msra.mxu0 %v326
    %348 = vmatpush.bf16.msra.mxu0 %v325
    %349 = vmatmul.bf16.gmra.mxu0 %v289
    %v350 = vpop.f32.mrf.mxu0
    %v351 = vadd.f32 0.0, %v350
    %v352 = vpop.f32.mrf.mxu0
    %v353 = vadd.f32 0.0, %v352
    %354 = vmatmul.bf16.gmra.mxu0 %v290
    %v355 = vpop.f32.mrf.mxu0
    %v356 = vadd.f32 0.0, %v355
    %v357 = vpop.f32.mrf.mxu0
    %358 = vdwg.mxu0
    %v375 = vunpack.c.l.b16 %v161
    %v376 = vunpack.c.l.b16 %v162
    %v377 = vunpack.c.l.b16 %v163
    %v378 = vunpack.c.l.b16 %v164
    %v379 = vunpack.c.l.b16 %v165
    %v380 = vunpack.c.l.b16 %v166
    %v381 = vunpack.c.l.b16 %v167
    %v382 = vunpack.c.l.b16 %v168
    %v383 = vunpack.c.l.b16 %v169
    %v384 = vunpack.c.l.b16 %v170
    %v385 = vunpack.c.l.b16 %v171
    %v386 = vunpack.c.l.b16 %v172
    %v387 = vunpack.c.l.b16 %v173
    %v388 = vunpack.c.l.b16 %v174
    %v389 = vunpack.c.l.b16 %v175
    %v390 = vunpack.c.l.b16 %v176
    %v391 = vpack.c.b16 %v376, %v375
    %v392 = vpack.c.b16 %v378, %v377
    %v393 = vpack.c.b16 %v380, %v379
    %v394 = vpack.c.b16 %v382, %v381
    %v395 = vpack.c.b16 %v384, %v383
    %v396 = vpack.c.b16 %v386, %v385
    %v397 = vpack.c.b16 %v388, %v387
    %v398 = vpack.c.b16 %v390, %v389
    %407 = vmatpush.bf16.msra.mxu0 %v398
    %408 = vmatpush.bf16.msra.mxu0 %v397
    %409 = vmatpush.bf16.msra.mxu0 %v396
    %410 = vmatpush.bf16.msra.mxu0 %v395
    %411 = vmatpush.bf16.msra.mxu0 %v394
    %412 = vmatpush.bf16.msra.mxu0 %v393
    %413 = vmatpush.bf16.msra.mxu0 %v392
    %414 = vmatpush.bf16.msra.mxu0 %v391
    %415 = vmatmul.bf16.gmra.mxu0 %v281
    %v416 = vpop.f32.mrf.mxu0
    %v417 = vadd.f32 %v351, %v416
    %v418 = vpop.f32.mrf.mxu0
    %v419 = vadd.f32 %v353, %v418
    %420 = vmatmul.bf16.gmra.mxu0 %v282
    %v421 = vpop.f32.mrf.mxu0
    %v422 = vadd.f32 %v356, %v421
    %v423 = vpop.f32.mrf.mxu0
    %424 = vdwg.mxu0
    %v425 = vmax.f32 %v417, 0.0
    %v426 = vmax.f32 %v419, 0.0
    %v427 = vmax.f32 %v422, 0.0
    %v428 = vlaneseq
    %v429 = vshrl.u32 %v428, 7
    %v430 = vadd.s32 %v429, 8
    %v431 = vadd.s32 %v429, 16
    %vm432 = vcmp.lt.s32.totalorder %v429, 0
    %v433 = vsub.s32 0, %v429
    %v434 = vsel %vm432, %v433, %v429
    %v435 = vshrl.u32 %v434, 1
    %v436 = vand.u32 %v434, 1
    %v437 = vsub.s32 0, %v436
    %v438 = vsel %vm432, %v437, %v436
    %vm439 = vcmp.lt.s32.totalorder %v430, 0
    %v440 = vsub.s32 0, %v430
    %v441 = vsel %vm439, %v440, %v430
    %v442 = vshrl.u32 %v441, 1
    %v443 = vand.u32 %v441, 1
    %v444 = vsub.s32 0, %v443
    %v445 = vsel %vm439, %v444, %v443
    %vm446 = vcmp.lt.s32.totalorder %v431, 0
    %v447 = vsub.s32 0, %v431
    %v448 = vsel %vm446, %v447, %v431
    %v449 = vshrl.u32 %v448, 1
    %v450 = vand.u32 %v448, 1
    %v451 = vsub.s32 0, %v450
    %v452 = vsel %vm446, %v451, %v450
    %vm453 = vcmp.ne.s32.totalorder %v438, 0
    %vm454 = vcmp.ne.s32.totalorder %v445, 0
    %vm455 = vcmp.ne.s32.totalorder %v452, 0
    %vm456 = vcmp.lt.s32.totalorder %v438, 0
    %vm457 = vcmp.lt.s32.totalorder %v445, 0
    %vm458 = vcmp.lt.s32.totalorder %v452, 0
    %vm459 = vmand %vm456, %vm453
    %vm460 = vmand %vm457, %vm454
    %vm461 = vmand %vm458, %vm455
    %v462 = vadd.s32 %v438, 2
    %v463 = vadd.s32 %v445, 2
    %v464 = vadd.s32 %v452, 2
    %v465 = vsel %vm459, %v462, %v438
    %v466 = vsel %vm460, %v463, %v445
    %v467 = vsel %vm461, %v464, %v452
    %vm468 = vcmp.eq.s32.totalorder %v465, 0
    %vm469 = vcmp.eq.s32.totalorder %v466, 0
    %vm470 = vcmp.eq.s32.totalorder %v467, 0
    %v471 = vpack.c.bf16 %v426, %v425
    %v472 = vpack.c.bf16 %v427, %v427
    %v475 = vunpack.c.l.b16 %v158
    %v476 = vunpack.c.l.b16 %v159
    %v477 = vpack.c.b16 %v476, %v475
    %vm478 = vcmask 195584
    %v480 = vsel %vm478, %v477, 0
    %vm482 = vcmask 1043456
    %v484 = vsel %vm482, %v472, 0
    %486 = vmatpush.bf16.msra.mxu0 0
    %487 = vmatpush.bf16.msra.mxu0 0
    %488 = vmatpush.bf16.msra.mxu0 0
    %489 = vmatpush.bf16.msra.mxu0 0
    %490 = vmatpush.bf16.msra.mxu0 0
    %491 = vmatpush.bf16.msra.mxu0 0
    %492 = vmatpush.bf16.msra.mxu0 %v484
    %493 = vmatpush.bf16.msra.mxu0 %v471
    %494 = vmatmul.bf16.gmra.mxu0 %v480
    %v495 = vpop.f32.mrf.mxu0
    %v496 = vadd.f32 0.0, %v495
    %v497 = vpop.f32.mrf.mxu0
    %v498 = vadd.f32 0.0, %v497
    %499 = vdwg.mxu0
    %v500 = vpack.c.bf16 %v498, %v496
    %501 = vmatpush.bf16.msra.mxu0 0
    %502 = vmatpush.bf16.msra.mxu0 0
    %503 = vmatpush.bf16.msra.mxu0 0
    %504 = vmatpush.bf16.msra.mxu0 0
    %505 = vmatpush.bf16.msra.mxu0 0
    %506 = vmatpush.bf16.msra.mxu0 0
    %507 = vmatpush.bf16.msra.mxu0 0
    %508 = vmatpush.bf16.msra.mxu0 %v500
    %509 = vmatmul.bf16.gmra.mxu0 %v258
    %v510 = vpop.f32.mrf.mxu0
    %v511 = vadd.f32 0.0, %v510
    %v512 = vpop.f32.mrf.mxu0
    %v513 = vadd.f32 0.0, %v512
    %514 = vmatmul.bf16.gmra.mxu0 %v261
    %v515 = vpop.f32.mrf.mxu0
    %v516 = vadd.f32 0.0, %v515
    %v517 = vpop.f32.mrf.mxu0
    %518 = vdwg.mxu0
    %vm522 = vcmask 1046528
    %v523 = vrot.slane %v425, 1
    %v524 = vrot.slane %v426, 1
    %v525 = vsel %vm522, %v523, %v524
    %v526 = vrot.slane %v427, 1
    %v527 = vsel %vm522, %v524, %v526
    %v532 = vsel %vm522, %v526, %v523
    %v533 = vrot.slane %v427, 7
    %vm535 = vcmask 1040384
    %v536 = vrot.slane %v425, 7
    %v537 = vrot.slane %v426, 7
    %v538 = vsel %vm535, %v536, %v537
    %v539 = vsel %vm535, %v537, %v533
    %v543 = vsel %vm535, %v533, %v536
    %v544 = vsel %vm468, %v525, %v543
    %v545 = vsel %vm469, %v527, %v538
    %v546 = vsel %vm470, %v532, %v539
    %v547 = vsub.f32 %v511, %v544
    %v548 = vsub.f32 %v513, %v545
    %v549 = vsub.f32 %v516, %v546
    %v550 = vpack.c.bf16 %v548, %v547
    %v551 = vpack.c.bf16 %v549, %v549
    %v568 = vunpack.c.l.b16 %v193
    %v569 = vunpack.c.l.b16 %v194
    %v570 = vunpack.c.l.b16 %v195
    %v571 = vunpack.c.l.b16 %v196
    %v572 = vunpack.c.l.b16 %v197
    %v573 = vunpack.c.l.b16 %v198
    %v574 = vunpack.c.l.b16 %v199
    %v575 = vunpack.c.l.b16 %v200
    %v576 = vunpack.c.l.b16 %v201
    %v577 = vunpack.c.l.b16 %v202
    %v578 = vunpack.c.l.b16 %v203
    %v579 = vunpack.c.l.b16 %v204
    %v580 = vunpack.c.l.b16 %v205
    %v581 = vunpack.c.l.b16 %v206
    %v582 = vunpack.c.l.b16 %v207
    %v583 = vunpack.c.l.b16 %v208
    %v584 = vpack.c.b16 %v569, %v568
    %v585 = vpack.c.b16 %v571, %v570
    %v586 = vpack.c.b16 %v573, %v572
    %v587 = vpack.c.b16 %v575, %v574
    %v588 = vpack.c.b16 %v577, %v576
    %v589 = vpack.c.b16 %v579, %v578
    %v590 = vpack.c.b16 %v581, %v580
    %v591 = vpack.c.b16 %v583, %v582
    %600 = vmatpush.bf16.msra.mxu0 %v591
    %601 = vmatpush.bf16.msra.mxu0 %v590
    %602 = vmatpush.bf16.msra.mxu0 %v589
    %603 = vmatpush.bf16.msra.mxu0 %v588
    %604 = vmatpush.bf16.msra.mxu0 %v587
    %605 = vmatpush.bf16.msra.mxu0 %v586
    %606 = vmatpush.bf16.msra.mxu0 %v585
    %607 = vmatpush.bf16.msra.mxu0 %v584
    %608 = vmatmul.bf16.gmra.mxu0 %v550
    %v609 = vpop.f32.mrf.mxu0
    %v610 = vadd.f32 0.0, %v609
    %v611 = vpop.f32.mrf.mxu0
    %v612 = vadd.f32 0.0, %v611
    %613 = vmatmul.bf16.gmra.mxu0 %v551
    %v614 = vpop.f32.mrf.mxu0
    %v615 = vadd.f32 0.0, %v614
    %v616 = vpop.f32.mrf.mxu0
    %617 = vdwg.mxu0
    %v618 = vadd.f32 %v425, %v610
    %v619 = vadd.f32 %v426, %v612
    %v620 = vadd.f32 %v427, %v615
    %v621 = vmax.f32 %v618, 0.0
    %v622 = vmax.f32 %v619, 0.0
    %v623 = vmax.f32 %v620, 0.0
    %v624 = vpack.c.bf16 %v622, %v621
    %v625 = vpack.c.bf16 %v623, %v623
    %v627 = vsel %vm482, %v625, 0
    %629 = vmatpush.bf16.msra.mxu0 0
    %630 = vmatpush.bf16.msra.mxu0 0
    %631 = vmatpush.bf16.msra.mxu0 0
    %632 = vmatpush.bf16.msra.mxu0 0
    %633 = vmatpush.bf16.msra.mxu0 0
    %634 = vmatpush.bf16.msra.mxu0 0
    %635 = vmatpush.bf16.msra.mxu0 %v627
    %636 = vmatpush.bf16.msra.mxu0 %v624
    %637 = vmatmul.bf16.gmra.mxu0 %v480
    %v638 = vpop.f32.mrf.mxu0
    %v639 = vadd.f32 0.0, %v638
    %v640 = vpop.f32.mrf.mxu0
    %v641 = vadd.f32 0.0, %v640
    %642 = vdwg.mxu0
    %v643 = vpack.c.bf16 %v641, %v639
    %644 = vmatpush.bf16.msra.mxu0 0
    %645 = vmatpush.bf16.msra.mxu0 0
    %646 = vmatpush.bf16.msra.mxu0 0
    %647 = vmatpush.bf16.msra.mxu0 0
    %648 = vmatpush.bf16.msra.mxu0 0
    %649 = vmatpush.bf16.msra.mxu0 0
    %650 = vmatpush.bf16.msra.mxu0 0
    %651 = vmatpush.bf16.msra.mxu0 %v643
    %652 = vmatmul.bf16.gmra.mxu0 %v258
    %v653 = vpop.f32.mrf.mxu0
    %v654 = vadd.f32 0.0, %v653
    %v655 = vpop.f32.mrf.mxu0
    %v656 = vadd.f32 0.0, %v655
    %657 = vmatmul.bf16.gmra.mxu0 %v261
    %v658 = vpop.f32.mrf.mxu0
    %v659 = vadd.f32 0.0, %v658
    %v660 = vpop.f32.mrf.mxu0
    %661 = vdwg.mxu0
    %v665 = vrot.slane %v621, 1
    %v666 = vrot.slane %v622, 1
    %v667 = vsel %vm522, %v665, %v666
    %v668 = vrot.slane %v623, 1
    %v669 = vsel %vm522, %v666, %v668
    %v674 = vsel %vm522, %v668, %v665
    %v675 = vrot.slane %v623, 7
    %v677 = vrot.slane %v621, 7
    %v678 = vrot.slane %v622, 7
    %v679 = vsel %vm535, %v677, %v678
    %v680 = vsel %vm535, %v678, %v675
    %v684 = vsel %vm535, %v675, %v677
    %v685 = vsel %vm468, %v667, %v684
    %v686 = vsel %vm469, %v669, %v679
    %v687 = vsel %vm470, %v674, %v680
    %v688 = vsub.f32 %v654, %v685
    %v689 = vsub.f32 %v656, %v686
    %v690 = vsub.f32 %v659, %v687
    %v691 = vpack.c.bf16 %v689, %v688
    %v692 = vpack.c.bf16 %v690, %v690
    %693 = vmatpush.bf16.msra.mxu0 %v591
    %694 = vmatpush.bf16.msra.mxu0 %v590
    %695 = vmatpush.bf16.msra.mxu0 %v589
    %696 = vmatpush.bf16.msra.mxu0 %v588
    %697 = vmatpush.bf16.msra.mxu0 %v587
    %698 = vmatpush.bf16.msra.mxu0 %v586
    %699 = vmatpush.bf16.msra.mxu0 %v585
    %700 = vmatpush.bf16.msra.mxu0 %v584
    %701 = vmatmul.bf16.gmra.mxu0 %v691
    %v702 = vpop.f32.mrf.mxu0
    %v703 = vadd.f32 0.0, %v702
    %v704 = vpop.f32.mrf.mxu0
    %v705 = vadd.f32 0.0, %v704
    %706 = vmatmul.bf16.gmra.mxu0 %v692
    %v707 = vpop.f32.mrf.mxu0
    %v708 = vadd.f32 0.0, %v707
    %v709 = vpop.f32.mrf.mxu0
    %710 = vdwg.mxu0
    %v711 = vadd.f32 %v425, %v703
    %v712 = vadd.f32 %v426, %v705
    %v713 = vadd.f32 %v427, %v708
    %v714 = vmax.f32 %v711, 0.0
    %v715 = vmax.f32 %v712, 0.0
    %v716 = vmax.f32 %v713, 0.0
    %v717 = vpack.c.bf16 %v715, %v714
    %v718 = vpack.c.bf16 %v716, %v716
    %v720 = vsel %vm482, %v718, 0
    %722 = vmatpush.bf16.msra.mxu0 0
    %723 = vmatpush.bf16.msra.mxu0 0
    %724 = vmatpush.bf16.msra.mxu0 0
    %725 = vmatpush.bf16.msra.mxu0 0
    %726 = vmatpush.bf16.msra.mxu0 0
    %727 = vmatpush.bf16.msra.mxu0 0
    %728 = vmatpush.bf16.msra.mxu0 %v720
    %729 = vmatpush.bf16.msra.mxu0 %v717
    %730 = vmatmul.bf16.gmra.mxu0 %v480
    %v731 = vpop.f32.mrf.mxu0
    %v732 = vadd.f32 0.0, %v731
    %v733 = vpop.f32.mrf.mxu0
    %v734 = vadd.f32 0.0, %v733
    %735 = vdwg.mxu0
    %v736 = vpack.c.bf16 %v734, %v732
    %v753 = vunpack.c.l.b16 %v225
    %v754 = vunpack.c.l.b16 %v226
    %v755 = vunpack.c.l.b16 %v227
    %v756 = vunpack.c.l.b16 %v228
    %v757 = vunpack.c.l.b16 %v229
    %v758 = vunpack.c.l.b16 %v230
    %v759 = vunpack.c.l.b16 %v231
    %v760 = vunpack.c.l.b16 %v232
    %v761 = vunpack.c.l.b16 %v233
    %v762 = vunpack.c.l.b16 %v234
    %v763 = vunpack.c.l.b16 %v235
    %v764 = vunpack.c.l.b16 %v236
    %v765 = vunpack.c.l.b16 %v237
    %v766 = vunpack.c.l.b16 %v238
    %v767 = vunpack.c.l.b16 %v239
    %v768 = vunpack.c.l.b16 %v240
    %v769 = vpack.c.b16 %v754, %v753
    %v770 = vpack.c.b16 %v756, %v755
    %v771 = vpack.c.b16 %v758, %v757
    %v772 = vpack.c.b16 %v760, %v759
    %v773 = vpack.c.b16 %v762, %v761
    %v774 = vpack.c.b16 %v764, %v763
    %v775 = vpack.c.b16 %v766, %v765
    %v776 = vpack.c.b16 %v768, %v767
    %785 = vmatpush.bf16.msra.mxu0 %v776
    %786 = vmatpush.bf16.msra.mxu0 %v775
    %787 = vmatpush.bf16.msra.mxu0 %v774
    %788 = vmatpush.bf16.msra.mxu0 %v773
    %789 = vmatpush.bf16.msra.mxu0 %v772
    %790 = vmatpush.bf16.msra.mxu0 %v771
    %791 = vmatpush.bf16.msra.mxu0 %v770
    %792 = vmatpush.bf16.msra.mxu0 %v769
    %793 = vmatmul.bf16.gmra.mxu0 %v736
    %v794 = vpop.f32.mrf.mxu0
    %v795 = vadd.f32 0.0, %v794
    %v796 = vpop.f32.mrf.mxu0
    %v797 = vadd.f32 0.0, %v796
    %798 = vdwg.mxu0
    %v815 = vunpack.c.l.b16 %v209
    %v816 = vunpack.c.l.b16 %v210
    %v817 = vunpack.c.l.b16 %v211
    %v818 = vunpack.c.l.b16 %v212
    %v819 = vunpack.c.l.b16 %v213
    %v820 = vunpack.c.l.b16 %v214
    %v821 = vunpack.c.l.b16 %v215
    %v822 = vunpack.c.l.b16 %v216
    %v823 = vunpack.c.l.b16 %v217
    %v824 = vunpack.c.l.b16 %v218
    %v825 = vunpack.c.l.b16 %v219
    %v826 = vunpack.c.l.b16 %v220
    %v827 = vunpack.c.l.b16 %v221
    %v828 = vunpack.c.l.b16 %v222
    %v829 = vunpack.c.l.b16 %v223
    %v830 = vunpack.c.l.b16 %v224
    %v831 = vpack.c.b16 %v816, %v815
    %v832 = vpack.c.b16 %v818, %v817
    %v833 = vpack.c.b16 %v820, %v819
    %v834 = vpack.c.b16 %v822, %v821
    %v835 = vpack.c.b16 %v824, %v823
    %v836 = vpack.c.b16 %v826, %v825
    %v837 = vpack.c.b16 %v828, %v827
    %v838 = vpack.c.b16 %v830, %v829
    %847 = vmatpush.bf16.msra.mxu0 %v838
    %848 = vmatpush.bf16.msra.mxu0 %v837
    %849 = vmatpush.bf16.msra.mxu0 %v836
    %850 = vmatpush.bf16.msra.mxu0 %v835
    %851 = vmatpush.bf16.msra.mxu0 %v834
    %852 = vmatpush.bf16.msra.mxu0 %v833
    %853 = vmatpush.bf16.msra.mxu0 %v832
    %854 = vmatpush.bf16.msra.mxu0 %v831
    %855 = vmatmul.bf16.gmra.mxu0 %v254
    %v856 = vpop.f32.mrf.mxu0
    %v857 = vadd.f32 %v795, %v856
    %v858 = vpop.f32.mrf.mxu0
    %v859 = vadd.f32 %v797, %v858
    %860 = vdwg.mxu0
    %v862 = vperm.slane %v241, 0
    %v864 = vadd.f32 %v857, %v862
    %v865 = vadd.f32 %v859, %v862
    %v866 = vmax.f32 %v864, 0.0
    %v867 = vmax.f32 %v865, 0.0
    %v868 = vpack.c.bf16 %v867, %v866
    %v870 = vsel %vm256, %v160, 0
    %872 = vmatpush.bf16.msra.mxu0 0
    %873 = vmatpush.bf16.msra.mxu0 0
    %874 = vmatpush.bf16.msra.mxu0 0
    %875 = vmatpush.bf16.msra.mxu0 0
    %876 = vmatpush.bf16.msra.mxu0 0
    %877 = vmatpush.bf16.msra.mxu0 0
    %878 = vmatpush.bf16.msra.mxu0 0
    %879 = vmatpush.bf16.msra.mxu0 %v868
    %880 = vmatmul.bf16.gmra.mxu0 %v870
    %v881 = vpop.f32.mrf.mxu0
    %v882 = vadd.f32 0.0, %v881
    %v883 = vpop.f32.mrf.mxu0
    %884 = vdwg.mxu0
    %v885 = vld [vmem:[%s5] sm:$0xff]
    %887 = vset.pattern.permute.xlu0 0
    %888 = vperm.xlu0 %887, %v885
    %v889 = vpop.permute.xlu0 %888
    %v891 = vmul.f32 %v882, %v889
    %892 = vst [vmem:[#allocation14] sm:$0xff] %v891
    // Predicated region
    $region78: #{tpu_custom_call.1} parent=1 // pred_check
      _
    $region79: #{tpu_custom_call.1} parent=1 // pred_check_branch
      %894 = sbr.rel (0) target = $region81
    $region80: #{tpu_custom_call.1} parent=1 // pred_region
      %896 = vsyncadd [#allocation4], 0
      %s898 = sshll.u32 [#allocation14], 4
      %s899 = int_to_ptr.vmem [resolvable:$true] %s898
      %s900 = sshll.u32 %s12, 4
      %s901 = int_to_ptr.hbm [resolvable:$true] %s900
      %903 = dma.vmem_to_hbm [thread:$0]  %s899, 128, %s901, [#allocation4]
    $region81: #{tpu_custom_call.1} parent=1 // pred_fallthru
      _
    // Predicated region
    $region82: #{tpu_custom_call.1} parent=1 // pred_check
      _
    $region83: #{tpu_custom_call.1} parent=1 // pred_check_branch
      %905 = sbr.rel (0) target = $region85
    $region84: #{tpu_custom_call.1} parent=1 // pred_region
      %907 = dma.done [#allocation4], 128
    $region85: #{tpu_custom_call.1} parent=1 // pred_fallthru
      _
    %908 = vsyncpa [#allocation3], 1
    %909 = vsyncpa [#allocation6], 1
    %910 = vsyncpa [#allocation9], 1
    %911 = vsyncpa [#allocation12], 1
    %912 = vsyncpa [#allocation4], 1

</llo_original>
